<compile_context>
chip_gen: v6e
topology: v6e:2x2x1
jax: 0.10.0
libtpu: 0.0.40
codegen_flags: <defaults>
</compile_context>

<pallas_src>
import math

import numpy as np
import jax
import jax.numpy as jnp
from jax.experimental import pallas as pl
from jax.experimental.pallas import tpu as pltpu

# ---- static config (small-scale mirror of CNNPostClassifier.__init__) ----
B = 2                  # batch
SEQ_LEN = 8            # extractor.padding_size -> Conv1d in_channels
EMB = 32               # embedding_size (conv runs over this axis)
OUT_SIZE = 32          # conv out_channels
KERNELS = (2, 3, 4, 5)
STRIDE = 2
VOCAB = 20             # number of words (plus one zero padding row)
N_ADD = 4              # len(nontext_inds)


def _out_len(n, k, s):
    return (n - k) // s + 1


CONV_L = tuple(_out_len(EMB, k, STRIDE) for k in KERNELS)                 # (16, 15, 15, 14)
POOL_P = tuple(_out_len(l, k, STRIDE) for l, k in zip(CONV_L, KERNELS))   # (8, 7, 6, 5)
TOT_P = sum(POOL_P)                                                       # 26
D_FC = OUT_SIZE * 2 * TOT_P + N_ADD                                       # 1668 ("3730" analogue)

# ---- fused-slab geometry ----
NBR = 2                          # text branches: reblog (0), nonreblog (1)
KMAX = max(KERNELS)              # 5  -> universal patch width SEQ_LEN*KMAX
L_MAX = CONV_L[0]                # 16 conv positions (k=2 superset; others use a prefix)
HALF = L_MAX // 2                # 8 even / 8 odd positions per (branch, batch)
CK5 = SEQ_LEN * KMAX             # 40 real contraction entries
CKP = 128                        # padded contraction dim (col 40 = conv-bias 1s)
OUTW = len(KERNELS) * OUT_SIZE   # 128 -> lane-dense conv output, 4 kernel sizes side by side
NBLK = NBR * len(KERNELS)        # 8 (kernel, branch) blocks for the fc slab
P_PAD = 8                        # pooled positions per block, padded
PATCH_ROWS = NBR * B * L_MAX     # 64 rows in the fused patch slab
XADD_OFF = PATCH_ROWS            # x_add rows start here in the activations slab
BIAS_COL = CK5                   # constant-1 column -> conv bias
FCB_COL = CKP - 1                # constant-1 column of x_add rows -> fc bias
WFC_OFF = CKP                    # fc-weight rows start here in the weights slab
WADD_OFF = WFC_OFF + NBLK * P_PAD   # 192: x_add fc weights (+ fc bias) rows
W_ROWS = WADD_OFF + 8            # 200 rows total in the weights slab

# Static proof that pooling windows only read valid conv positions (< L_k) for
# every kernel size, so the folded conv bias on shared rows can never leak in.
for _ki, _k in enumerate(KERNELS):
    _P = POOL_P[_ki]
    _n_odd, _n_even = _k // 2, (_k + 1) // 2
    assert 2 * (_n_even - 1 + _P - 1) <= CONV_L[_ki] - 1        # max even position read
    assert 2 * (_n_odd - 1 + _P - 1) + 1 <= CONV_L[_ki] - 1     # max odd position read
    assert _n_even - 1 + _P - 1 <= HALF - 1                      # stays inside the 8-row half


# ---------------------------- Pallas kernel -------------------------------
def cnn_post_kernel(acts_ref, w_ref, out_ref):
    # acts slab rows: [0:64) universal im2col patches, [64:64+B) padded x_add rows.
    # weights slab rows: [0:128) conv weights (+bias row 40), [128:192) fc weights
    # per (kernel, branch) block, [192:200) x_add fc weights (+fc bias col 127).
    patches = acts_ref[0:PATCH_ROWS, :]                     # (64, 128)
    wconv = w_ref[0:CKP, :]                                 # (128, 128)

    # One fused MXU matmul for all 4 conv kernel sizes x 2 text branches; conv
    # bias folded via the constant-1 column.  (Default f32 precision is ample
    # for this 41-term contraction; see review note.)
    conv = jnp.maximum(
        jnp.dot(patches, wconv, preferred_element_type=jnp.float32), 0.0)
    conv6 = conv.reshape(NBR, B, 2, HALF, OUTW)             # tile-aligned regroup (free)

    # Running (B, 128) lane accumulator: x_add . w_add + fc bias to start.
    acc = acts_ref[XADD_OFF:XADD_OFF + B, :] * w_ref[WADD_OFF:WADD_OFF + B, :]

    for br in range(NBR):
        E = conv6[br, :, 0]                                 # (B, 8, 128) even conv positions
        O = conv6[br, :, 1]                                 # (B, 8, 128) odd conv positions
        M = jnp.maximum(E, O)                               # shared max(E, O), VALU
        for ki, k in enumerate(KERNELS):
            P = POOL_P[ki]
            n_odd, n_even = k // 2, (k + 1) // 2
            # MaxPool1d(k, stride=2): window at pooled pos p = positions 2p..2p+k-1
            #   = max over m<n_odd of M[p+m]  (+ E[p+n_odd] when k is odd).
            pooled = M[:, 0:P, :]
            for s in range(1, n_odd):
                pooled = jnp.maximum(pooled, M[:, s:s + P, :])
            for s in range(n_odd, n_even):
                pooled = jnp.maximum(pooled, E[:, s:s + P, :])
            # FC contribution: the fc-weight slab is zero outside this block's
            # 32 output lanes, so no lane slicing; only a sublane (P-axis) sum
            # feeds the accumulator -- no cross-lane reduce here.
            blk = 2 * ki + br                               # matches torch concat order
            wf = w_ref[WFC_OFF + blk * P_PAD:WFC_OFF + blk * P_PAD + P, :]   # (P, 128)
            acc = acc + jnp.sum(pooled * wf[None, :, :], axis=1)

    s = jnp.sum(acc, axis=1, keepdims=True)                 # the ONE cross-lane reduction
    out_ref[...] = jnp.broadcast_to(1.0 / (1.0 + jnp.exp(-s)), (B, OUTW))


# ----------------- one-time (hoisted) weight-slab construction -------------
def prepare_weight_slab(conv_w, conv_b, fc_w, fc_b):
    """Bakes conv/fc parameters into one (W_ROWS, 128) f32 slab.  Runs ONCE at
    model-setup time (plain numpy), never in the per-call forward path."""
    w = np.zeros((W_ROWS, CKP), np.float32)
    # conv weights: row c*KMAX + j, lanes ki*32..; zero rows for j >= k make the
    # universal patch exact for every kernel size.  Row 40 = conv bias.
    for ki, k in enumerate(KERNELS):
        wk = np.asarray(conv_w[ki])                         # (OUT_SIZE, SEQ_LEN, k)
        for j in range(k):
            w[np.arange(SEQ_LEN) * KMAX + j,
              ki * OUT_SIZE:(ki + 1) * OUT_SIZE] = wk[:, :, j].T
        w[BIAS_COL, ki * OUT_SIZE:(ki + 1) * OUT_SIZE] = np.asarray(conv_b[ki])
    # fc weights for the pooled text features, in (block, pool-pos, channel)
    # layout matching torch.cat((x1r, x1n, ..., x4n), dim=2).reshape(B, -1).
    w_text = np.asarray(fc_w)[0, :OUT_SIZE * 2 * TOT_P].reshape(OUT_SIZE, 2 * TOT_P)
    off = 0
    for blk in range(NBLK):
        ki = blk // 2
        P = POOL_P[ki]
        w[WFC_OFF + blk * P_PAD:WFC_OFF + blk * P_PAD + P,
          ki * OUT_SIZE:(ki + 1) * OUT_SIZE] = w_text[:, off:off + P].T
        off += P
    # x_add fc weights + fc bias (lane 127), replicated across 8 rows.
    w_add = np.zeros((CKP,), np.float32)
    w_add[:N_ADD] = np.asarray(fc_w)[0, OUT_SIZE * 2 * TOT_P:]
    w_add[FCB_COL] = np.asarray(fc_b)[0]
    w[WADD_OFF:WADD_OFF + 8, :] = w_add[None, :]
    return jnp.asarray(w)


# ----------------------------- JAX wrapper ---------------------------------
@jax.jit
def cnn_post_classifier(x, emb_table, w_slab):
    # column split (reblog / nonreblog / nontext are contiguous ranges here)
    xr_idx = x[:, :SEQ_LEN].astype(jnp.int32)
    xn_idx = x[:, SEQ_LEN:2 * SEQ_LEN].astype(jnp.int32)
    x_add = x[:, 2 * SEQ_LEN:2 * SEQ_LEN + N_ADD].astype(jnp.float32)

    # one embedding gather for both branches (padding_idx=0 row is zeros)
    idx = jnp.stack([xr_idx, xn_idx], axis=0)               # (2, B, SEQ_LEN)
    emb = emb_table[idx]                                     # (2, B, SEQ_LEN, EMB)

    # ---- universal im2col patch slab, parity-major positions ----
    # patch[(br, b, parity, half), c*KMAX + j] = emb[br, b, c, 2*(2*half+parity) + j]
    pad_w = STRIDE * (L_MAX - 1) + KMAX - EMB                # 3
    xp = jnp.pad(emb, ((0, 0), (0, 0), (0, 0), (0, pad_w)))  # (2, B, 8, 35)
    cols = [xp[:, :, :, STRIDE * par + j: STRIDE * par + j + 2 * STRIDE * HALF: 2 * STRIDE]
            for par in range(2) for j in range(KMAX)]        # 10 x (2, B, 8, 8)
    pat = jnp.stack(cols, axis=2)                            # (2, B, 10, 8, 8)
    pat = pat.reshape(NBR, B, 2, KMAX, SEQ_LEN, HALF)        # (br, b, par, j, c, half)
    pat = pat.transpose(0, 1, 2, 5, 4, 3)                    # (br, b, par, half, c, j)
    pat = pat.reshape(PATCH_ROWS, CK5)                       # (64, 40)
    patches = jnp.concatenate(
        [pat,
         jnp.ones((PATCH_ROWS, 1), jnp.float32),             # constant-1 col -> conv bias
         jnp.zeros((PATCH_ROWS, CKP - CK5 - 1), jnp.float32)], axis=1)   # (64, 128)

    # x_add rows ride along in the same activations slab (fc bias via 1s in col 127)
    xadd_rows = jnp.concatenate(
        [x_add,
         jnp.zeros((B, CKP - N_ADD - 1), jnp.float32),
         jnp.ones((B, 1), jnp.float32)], axis=1)             # (B, 128)
    acts = jnp.concatenate([patches, xadd_rows], axis=0)     # (64 + B, 128)

    vmem = pl.BlockSpec(memory_space=pltpu.MemorySpace.VMEM)
    # TODO(synk): keep single-invocation / no grid until per-core work is
    # compute-bound; a batch grid or second-TC split is a regression at B=2.
    out = pl.pallas_call(
        cnn_post_kernel,
        out_shape=jax.ShapeDtypeStruct((B, OUTW), jnp.float32),   # lane-dense output
        in_specs=[vmem, vmem],
        out_specs=vmem,
    )(acts, w_slab)
    return out[:, 0]                                          # matches out.squeeze()


# --------------------- deterministic parameter init -----------------------
def init_params(key):
    keys = jax.random.split(key, 11)
    emb = jax.random.normal(keys[0], (VOCAB, EMB), jnp.float32) * 0.1
    emb_table = jnp.concatenate([jnp.zeros((1, EMB), jnp.float32), emb], axis=0)
    conv_w, conv_b = [], []
    for i, k in enumerate(KERNELS):
        bound = 1.0 / math.sqrt(SEQ_LEN * k)
        conv_w.append(jax.random.uniform(keys[1 + i], (OUT_SIZE, SEQ_LEN, k),
                                         jnp.float32, -bound, bound))
        conv_b.append(jax.random.uniform(keys[5 + i], (OUT_SIZE,),
                                         jnp.float32, -bound, bound))
    bound_fc = 1.0 / math.sqrt(D_FC)
    fc_w = jax.random.uniform(keys[9], (1, D_FC), jnp.float32, -bound_fc, bound_fc)
    fc_b = jax.random.uniform(keys[10], (1,), jnp.float32, -bound_fc, bound_fc)
    return emb_table, conv_w, conv_b, fc_w, fc_b


# ------------------------ pure-JAX reference check -------------------------
def reference_forward(x, emb_table, conv_w, conv_b, fc_w, fc_b):
    hi = jax.lax.Precision.HIGHEST
    xr = emb_table[x[:, :SEQ_LEN].astype(jnp.int32)]
    xn = emb_table[x[:, SEQ_LEN:2 * SEQ_LEN].astype(jnp.int32)]
    x_add = x[:, 2 * SEQ_LEN:2 * SEQ_LEN + N_ADD].astype(jnp.float32)
    outs = []
    for ki, k in enumerate(KERNELS):
        for xt in (xr, xn):
            c = jax.lax.conv_general_dilated(
                xt, conv_w[ki], window_strides=(STRIDE,), padding="VALID",
                dimension_numbers=("NCH", "OIH", "NCH"), precision=hi)
            c = jnp.maximum(c + conv_b[ki][None, :, None], 0.0)
            P = POOL_P[ki]
            pooled = jnp.stack(
                [jnp.max(c[:, :, STRIDE * p:STRIDE * p + k], axis=2) for p in range(P)],
                axis=2)                                       # (B, OUT_SIZE, P)
            outs.append(pooled)
    union = jnp.concatenate(outs, axis=2).reshape(B, -1)
    flat = jnp.concatenate([union, x_add], axis=1)
    lin = jnp.dot(flat, fc_w.T, precision=hi) + fc_b
    return (1.0 / (1.0 + jnp.exp(-lin)))[:, 0]


if __name__ == "__main__":
    key = jax.random.PRNGKey(0)
    k_param, k_idx, k_add = jax.random.split(key, 3)
    emb_table, conv_w, conv_b, fc_w, fc_b = init_params(k_param)

    # One-time, off-the-hot-path weight slab (review item 1).
    w_slab = prepare_weight_slab(conv_w, conv_b, fc_w, fc_b)

    text_idx = jax.random.randint(k_idx, (B, 2 * SEQ_LEN), 0, VOCAB + 1).astype(jnp.float32)
    add_feats = jax.random.normal(k_add, (B, N_ADD), jnp.float32)
    x = jnp.concatenate([text_idx, add_feats], axis=1)        # (B, 20)

    out = jax.block_until_ready(cnn_post_classifier(x, emb_table, w_slab))
    ref = jax.block_until_ready(
        reference_forward(x, emb_table, conv_w, conv_b, fc_w, fc_b))

    assert out.shape == (B,)
    assert np.allclose(np.asarray(out), np.asarray(ref), atol=1e-4, rtol=1e-4)
    print("KERNEL_OK")
</pallas_src>

<mosaic_0001>
module attributes {stable_mosaic.version = 11 : i64} {
  func.func @cnn_post_kernel(%arg0: memref<66x128xf32, #tpu.memory_space<vmem>>, %arg1: memref<200x128xf32, #tpu.memory_space<vmem>>, %arg2: memref<2x128xf32, #tpu.memory_space<vmem>>) attributes {dimension_semantics = [], scalar_prefetch = 0 : i64, scratch_operands = 0 : i64, tpu.core_type = #tpu.core_type<tc>} {
    %c0 = arith.constant 0 : index
    %c0_0 = arith.constant 0 : index
    %0 = vector.load %arg0[%c0, %c0_0] : memref<66x128xf32, #tpu.memory_space<vmem>>, vector<64x128xf32>
    %c0_1 = arith.constant 0 : index
    %c0_2 = arith.constant 0 : index
    %1 = vector.load %arg1[%c0_1, %c0_2] : memref<200x128xf32, #tpu.memory_space<vmem>>, vector<128x128xf32>
    %cst = arith.constant dense<0.000000e+00> : vector<64x128xf32>
    %2 = tpu.matmul %0, %1, %cst {dimension_numbers = #tpu.dot_dimension_numbers<[1], [0], [0], [1], [0, 0, 1, 1], [], []>} : vector<64x128xf32>, vector<128x128xf32>, vector<64x128xf32> -> vector<64x128xf32>
    %cst_3 = arith.constant 0.000000e+00 : f32
    %3 = vector.broadcast %cst_3 : f32 to vector<64x128xf32>
    %4 = arith.maximumf %2, %3 : vector<64x128xf32>
    %5 = vector.shape_cast %4 : vector<64x128xf32> to vector<2x2x2x8x128xf32>
    %c64 = arith.constant 64 : index
    %c0_4 = arith.constant 0 : index
    %6 = vector.load %arg0[%c64, %c0_4] : memref<66x128xf32, #tpu.memory_space<vmem>>, vector<2x128xf32>
    %c192 = arith.constant 192 : index
    %c0_5 = arith.constant 0 : index
    %7 = vector.load %arg1[%c192, %c0_5] : memref<200x128xf32, #tpu.memory_space<vmem>>, vector<2x128xf32>
    %8 = arith.mulf %6, %7 : vector<2x128xf32>
    %9 = vector.extract_strided_slice %5 {offsets = [0, 0, 0, 0, 0], sizes = [1, 2, 1, 8, 128], strides = [1, 1, 1, 1, 1]} : vector<2x2x2x8x128xf32> to vector<1x2x1x8x128xf32>
    %10 = vector.shape_cast %9 : vector<1x2x1x8x128xf32> to vector<2x8x128xf32>
    %11 = vector.extract_strided_slice %5 {offsets = [0, 0, 1, 0, 0], sizes = [1, 2, 1, 8, 128], strides = [1, 1, 1, 1, 1]} : vector<2x2x2x8x128xf32> to vector<1x2x1x8x128xf32>
    %12 = vector.shape_cast %11 : vector<1x2x1x8x128xf32> to vector<2x8x128xf32>
    %13 = arith.maximumf %10, %12 : vector<2x8x128xf32>
    %c128 = arith.constant 128 : index
    %c0_6 = arith.constant 0 : index
    %14 = vector.load %arg1[%c128, %c0_6] : memref<200x128xf32, #tpu.memory_space<vmem>>, vector<8x128xf32>
    %15 = vector.shape_cast %14 : vector<8x128xf32> to vector<1x8x128xf32>
    %16 = vector.broadcast %15 : vector<1x8x128xf32> to vector<2x8x128xf32>
    %17 = arith.mulf %13, %16 : vector<2x8x128xf32>
    %cst_7 = arith.constant dense<0.000000e+00> : vector<2x128xf32>
    %18 = vector.multi_reduction <add>, %17, %cst_7 [1] : vector<2x8x128xf32> to vector<2x128xf32>
    %19 = arith.addf %8, %18 : vector<2x128xf32>
    %20 = vector.extract_strided_slice %13 {offsets = [0, 0, 0], sizes = [2, 7, 128], strides = [1, 1, 1]} : vector<2x8x128xf32> to vector<2x7x128xf32>
    %21 = vector.extract_strided_slice %10 {offsets = [0, 1, 0], sizes = [2, 7, 128], strides = [1, 1, 1]} : vector<2x8x128xf32> to vector<2x7x128xf32>
    %22 = arith.maximumf %20, %21 : vector<2x7x128xf32>
    %c144 = arith.constant 144 : index
    %c0_8 = arith.constant 0 : index
    %23 = vector.load %arg1[%c144, %c0_8] : memref<200x128xf32, #tpu.memory_space<vmem>>, vector<7x128xf32>
    %24 = vector.shape_cast %23 : vector<7x128xf32> to vector<1x7x128xf32>
    %25 = vector.broadcast %24 : vector<1x7x128xf32> to vector<2x7x128xf32>
    %26 = arith.mulf %22, %25 : vector<2x7x128xf32>
    %cst_9 = arith.constant dense<0.000000e+00> : vector<2x128xf32>
    %27 = vector.multi_reduction <add>, %26, %cst_9 [1] : vector<2x7x128xf32> to vector<2x128xf32>
    %28 = arith.addf %19, %27 : vector<2x128xf32>
    %29 = vector.extract_strided_slice %13 {offsets = [0, 0, 0], sizes = [2, 6, 128], strides = [1, 1, 1]} : vector<2x8x128xf32> to vector<2x6x128xf32>
    %30 = vector.extract_strided_slice %13 {offsets = [0, 1, 0], sizes = [2, 6, 128], strides = [1, 1, 1]} : vector<2x8x128xf32> to vector<2x6x128xf32>
    %31 = arith.maximumf %29, %30 : vector<2x6x128xf32>
    %c160 = arith.constant 160 : index
    %c0_10 = arith.constant 0 : index
    %32 = vector.load %arg1[%c160, %c0_10] : memref<200x128xf32, #tpu.memory_space<vmem>>, vector<6x128xf32>
    %33 = vector.shape_cast %32 : vector<6x128xf32> to vector<1x6x128xf32>
    %34 = vector.broadcast %33 : vector<1x6x128xf32> to vector<2x6x128xf32>
    %35 = arith.mulf %31, %34 : vector<2x6x128xf32>
    %cst_11 = arith.constant dense<0.000000e+00> : vector<2x128xf32>
    %36 = vector.multi_reduction <add>, %35, %cst_11 [1] : vector<2x6x128xf32> to vector<2x128xf32>
    %37 = arith.addf %28, %36 : vector<2x128xf32>
    %38 = vector.extract_strided_slice %13 {offsets = [0, 0, 0], sizes = [2, 5, 128], strides = [1, 1, 1]} : vector<2x8x128xf32> to vector<2x5x128xf32>
    %39 = vector.extract_strided_slice %13 {offsets = [0, 1, 0], sizes = [2, 5, 128], strides = [1, 1, 1]} : vector<2x8x128xf32> to vector<2x5x128xf32>
    %40 = arith.maximumf %38, %39 : vector<2x5x128xf32>
    %41 = vector.extract_strided_slice %10 {offsets = [0, 2, 0], sizes = [2, 5, 128], strides = [1, 1, 1]} : vector<2x8x128xf32> to vector<2x5x128xf32>
    %42 = arith.maximumf %40, %41 : vector<2x5x128xf32>
    %c176 = arith.constant 176 : index
    %c0_12 = arith.constant 0 : index
    %43 = vector.load %arg1[%c176, %c0_12] : memref<200x128xf32, #tpu.memory_space<vmem>>, vector<5x128xf32>
    %44 = vector.shape_cast %43 : vector<5x128xf32> to vector<1x5x128xf32>
    %45 = vector.broadcast %44 : vector<1x5x128xf32> to vector<2x5x128xf32>
    %46 = arith.mulf %42, %45 : vector<2x5x128xf32>
    %cst_13 = arith.constant dense<0.000000e+00> : vector<2x128xf32>
    %47 = vector.multi_reduction <add>, %46, %cst_13 [1] : vector<2x5x128xf32> to vector<2x128xf32>
    %48 = arith.addf %37, %47 : vector<2x128xf32>
    %49 = vector.extract_strided_slice %5 {offsets = [1, 0, 0, 0, 0], sizes = [1, 2, 1, 8, 128], strides = [1, 1, 1, 1, 1]} : vector<2x2x2x8x128xf32> to vector<1x2x1x8x128xf32>
    %50 = vector.shape_cast %49 : vector<1x2x1x8x128xf32> to vector<2x8x128xf32>
    %51 = vector.extract_strided_slice %5 {offsets = [1, 0, 1, 0, 0], sizes = [1, 2, 1, 8, 128], strides = [1, 1, 1, 1, 1]} : vector<2x2x2x8x128xf32> to vector<1x2x1x8x128xf32>
    %52 = vector.shape_cast %51 : vector<1x2x1x8x128xf32> to vector<2x8x128xf32>
    %53 = arith.maximumf %50, %52 : vector<2x8x128xf32>
    %c136 = arith.constant 136 : index
    %c0_14 = arith.constant 0 : index
    %54 = vector.load %arg1[%c136, %c0_14] : memref<200x128xf32, #tpu.memory_space<vmem>>, vector<8x128xf32>
    %55 = vector.shape_cast %54 : vector<8x128xf32> to vector<1x8x128xf32>
    %56 = vector.broadcast %55 : vector<1x8x128xf32> to vector<2x8x128xf32>
    %57 = arith.mulf %53, %56 : vector<2x8x128xf32>
    %cst_15 = arith.constant dense<0.000000e+00> : vector<2x128xf32>
    %58 = vector.multi_reduction <add>, %57, %cst_15 [1] : vector<2x8x128xf32> to vector<2x128xf32>
    %59 = arith.addf %48, %58 : vector<2x128xf32>
    %60 = vector.extract_strided_slice %53 {offsets = [0, 0, 0], sizes = [2, 7, 128], strides = [1, 1, 1]} : vector<2x8x128xf32> to vector<2x7x128xf32>
    %61 = vector.extract_strided_slice %50 {offsets = [0, 1, 0], sizes = [2, 7, 128], strides = [1, 1, 1]} : vector<2x8x128xf32> to vector<2x7x128xf32>
    %62 = arith.maximumf %60, %61 : vector<2x7x128xf32>
    %c152 = arith.constant 152 : index
    %c0_16 = arith.constant 0 : index
    %63 = vector.load %arg1[%c152, %c0_16] : memref<200x128xf32, #tpu.memory_space<vmem>>, vector<7x128xf32>
    %64 = vector.shape_cast %63 : vector<7x128xf32> to vector<1x7x128xf32>
    %65 = vector.broadcast %64 : vector<1x7x128xf32> to vector<2x7x128xf32>
    %66 = arith.mulf %62, %65 : vector<2x7x128xf32>
    %cst_17 = arith.constant dense<0.000000e+00> : vector<2x128xf32>
    %67 = vector.multi_reduction <add>, %66, %cst_17 [1] : vector<2x7x128xf32> to vector<2x128xf32>
    %68 = arith.addf %59, %67 : vector<2x128xf32>
    %69 = vector.extract_strided_slice %53 {offsets = [0, 0, 0], sizes = [2, 6, 128], strides = [1, 1, 1]} : vector<2x8x128xf32> to vector<2x6x128xf32>
    %70 = vector.extract_strided_slice %53 {offsets = [0, 1, 0], sizes = [2, 6, 128], strides = [1, 1, 1]} : vector<2x8x128xf32> to vector<2x6x128xf32>
    %71 = arith.maximumf %69, %70 : vector<2x6x128xf32>
    %c168 = arith.constant 168 : index
    %c0_18 = arith.constant 0 : index
    %72 = vector.load %arg1[%c168, %c0_18] : memref<200x128xf32, #tpu.memory_space<vmem>>, vector<6x128xf32>
    %73 = vector.shape_cast %72 : vector<6x128xf32> to vector<1x6x128xf32>
    %74 = vector.broadcast %73 : vector<1x6x128xf32> to vector<2x6x128xf32>
    %75 = arith.mulf %71, %74 : vector<2x6x128xf32>
    %cst_19 = arith.constant dense<0.000000e+00> : vector<2x128xf32>
    %76 = vector.multi_reduction <add>, %75, %cst_19 [1] : vector<2x6x128xf32> to vector<2x128xf32>
    %77 = arith.addf %68, %76 : vector<2x128xf32>
    %78 = vector.extract_strided_slice %53 {offsets = [0, 0, 0], sizes = [2, 5, 128], strides = [1, 1, 1]} : vector<2x8x128xf32> to vector<2x5x128xf32>
    %79 = vector.extract_strided_slice %53 {offsets = [0, 1, 0], sizes = [2, 5, 128], strides = [1, 1, 1]} : vector<2x8x128xf32> to vector<2x5x128xf32>
    %80 = arith.maximumf %78, %79 : vector<2x5x128xf32>
    %81 = vector.extract_strided_slice %50 {offsets = [0, 2, 0], sizes = [2, 5, 128], strides = [1, 1, 1]} : vector<2x8x128xf32> to vector<2x5x128xf32>
    %82 = arith.maximumf %80, %81 : vector<2x5x128xf32>
    %c184 = arith.constant 184 : index
    %c0_20 = arith.constant 0 : index
    %83 = vector.load %arg1[%c184, %c0_20] : memref<200x128xf32, #tpu.memory_space<vmem>>, vector<5x128xf32>
    %84 = vector.shape_cast %83 : vector<5x128xf32> to vector<1x5x128xf32>
    %85 = vector.broadcast %84 : vector<1x5x128xf32> to vector<2x5x128xf32>
    %86 = arith.mulf %82, %85 : vector<2x5x128xf32>
    %cst_21 = arith.constant dense<0.000000e+00> : vector<2x128xf32>
    %87 = vector.multi_reduction <add>, %86, %cst_21 [1] : vector<2x5x128xf32> to vector<2x128xf32>
    %88 = arith.addf %77, %87 : vector<2x128xf32>
    %cst_22 = arith.constant dense<0.000000e+00> : vector<2xf32>
    %89 = vector.multi_reduction <add>, %88, %cst_22 [1] : vector<2x128xf32> to vector<2xf32>
    %90 = vector.shape_cast %89 : vector<2xf32> to vector<2x1xf32>
    %cst_23 = arith.constant 0.000000e+00 : f32
    %91 = vector.broadcast %cst_23 : f32 to vector<2x1xf32>
    %92 = arith.subf %91, %90 : vector<2x1xf32>
    %93 = math.exp %92 : vector<2x1xf32>
    %cst_24 = arith.constant 1.000000e+00 : f32
    %94 = vector.broadcast %cst_24 : f32 to vector<2x1xf32>
    %95 = arith.addf %94, %93 : vector<2x1xf32>
    %cst_25 = arith.constant 1.000000e+00 : f32
    %96 = vector.broadcast %cst_25 : f32 to vector<2x1xf32>
    %97 = arith.divf %96, %95 : vector<2x1xf32>
    %98 = vector.shape_cast %97 : vector<2x1xf32> to vector<2x1xf32>
    %99 = vector.broadcast %98 : vector<2x1xf32> to vector<2x128xf32>
    %c0_26 = arith.constant 0 : index
    %c0_27 = arith.constant 0 : index
    %100 = vector.load %arg2[%c0_26, %c0_27] : memref<2x128xf32, #tpu.memory_space<vmem>>, vector<2x128xf32>
    tpu.vector_store %arg2[%c0_26, %c0_27], %99 {strides = array<i32>} : memref<2x128xf32, #tpu.memory_space<vmem>>, vector<2x128xf32>,
    return
  }
}

</mosaic_0001>

<llo_original>
// kernel: cnn_post_classifier.1
$region0: #{cnn_post_classifier.1}
  #allocation0 [shape = 'u32[]', space=smem, size = 0x4, offset = 0x4, fixed_abs, tag = 'smem constant byte address 0x4 - core index']
  #allocation1 [shape = 'u32[144,128]{1,0:T(1,128)}', space=vmem, size = 0x12000, scoped, tag = 'internal scratch']
  %s0 = inlined_call_operand.vmem [shape: f32[66,128], index: 0, kind: input, shape index: {}]
  %s1 = inlined_call_operand.vmem [shape: f32[200,128], index: 1, kind: input, shape index: {}]
  %s2 = inlined_call_operand.vmem [shape: f32[2,128], index: 2, kind: output, shape index: {}]
  %s3 = sld [smem:[#allocation0]]
  $region18: #{cnn_post_classifier.1} parent=0
    _
  %s5 = ssub.s32 1, %s3
  %s6 = scalar_select 0, %s5, %s3
  // Predicated region
  $region2: #{cnn_post_classifier.1} parent=0 // pred_check
    _
  $region3: #{cnn_post_classifier.1} parent=0 // pred_check_branch
    %8 = sbr.rel (0) target = $region5
  $region4: #{cnn_post_classifier.1} parent=0 // pred_region
    _
  $region5: #{cnn_post_classifier.1} parent=0 // pred_fallthru
    _
  // Predicated region
  $region6: #{cnn_post_classifier.1} parent=0 // pred_check
    _
  $region7: #{cnn_post_classifier.1} parent=0 // pred_check_branch
    %10 = sbr.rel (0) target = $region9
  $region8: #{cnn_post_classifier.1} parent=0 // pred_region
    _
  $region9: #{cnn_post_classifier.1} parent=0 // pred_fallthru
    _
  %v11 = vld [vmem:[%s0] sm:$0xff]
  %v12 = vld [vmem:[%s0 + $0x8] sm:$0xff]
  %v13 = vld [vmem:[%s0 + $0x10] sm:$0xff]
  %v14 = vld [vmem:[%s0 + $0x18] sm:$0xff]
  %v15 = vld [vmem:[%s0 + $0x20] sm:$0xff]
  %v16 = vld [vmem:[%s0 + $0x28] sm:$0xff]
  %v17 = vld [vmem:[%s0 + $0x30] sm:$0xff]
  %v18 = vld [vmem:[%s0 + $0x38] sm:$0xff]
  %v19 = vld [vmem:[%s1] sm:$0xff]
  %v20 = vld [vmem:[%s1 + $0x8] sm:$0xff]
  %v21 = vld [vmem:[%s1 + $0x10] sm:$0xff]
  %v22 = vld [vmem:[%s1 + $0x18] sm:$0xff]
  %v23 = vld [vmem:[%s1 + $0x20] sm:$0xff]
  %v24 = vld [vmem:[%s1 + $0x28] sm:$0xff]
  %v25 = vld [vmem:[%s1 + $0x30] sm:$0xff]
  %v26 = vld [vmem:[%s1 + $0x38] sm:$0xff]
  %v27 = vld [vmem:[%s1 + $0x40] sm:$0xff]
  %v28 = vld [vmem:[%s1 + $0x48] sm:$0xff]
  %v29 = vld [vmem:[%s1 + $0x50] sm:$0xff]
  %v30 = vld [vmem:[%s1 + $0x58] sm:$0xff]
  %v31 = vld [vmem:[%s1 + $0x60] sm:$0xff]
  %v32 = vld [vmem:[%s1 + $0x68] sm:$0xff]
  %v33 = vld [vmem:[%s1 + $0x70] sm:$0xff]
  %v34 = vld [vmem:[%s1 + $0x78] sm:$0xff]
  %35 = vmatprep.subr.mxu0 0.0
  %36 = vmatpush1.msra.mxu0 %v34
  %37 = vmatprep.subr.mxu0 0.0
  %38 = vmatpush1.msra.mxu0 %v33
  %39 = vmatprep.subr.mxu0 0.0
  %40 = vmatpush1.msra.mxu0 %v32
  %41 = vmatprep.subr.mxu0 0.0
  %42 = vmatpush1.msra.mxu0 %v31
  %43 = vmatprep.subr.mxu0 0.0
  %44 = vmatpush1.msra.mxu0 %v30
  %45 = vmatprep.subr.mxu0 0.0
  %46 = vmatpush1.msra.mxu0 %v29
  %47 = vmatprep.subr.mxu0 0.0
  %48 = vmatpush1.msra.mxu0 %v28
  %49 = vmatprep.subr.mxu0 0.0
  %50 = vmatpush1.msra.mxu0 %v27
  %51 = vmatprep.subr.mxu0 0.0
  %52 = vmatpush1.msra.mxu0 %v26
  %53 = vmatprep.subr.mxu0 0.0
  %54 = vmatpush1.msra.mxu0 %v25
  %55 = vmatprep.subr.mxu0 0.0
  %56 = vmatpush1.msra.mxu0 %v24
  %57 = vmatprep.subr.mxu0 0.0
  %58 = vmatpush1.msra.mxu0 %v23
  %59 = vmatprep.subr.mxu0 0.0
  %60 = vmatpush1.msra.mxu0 %v22
  %61 = vmatprep.subr.mxu0 0.0
  %62 = vmatpush1.msra.mxu0 %v21
  %63 = vmatprep.subr.mxu0 0.0
  %64 = vmatpush1.msra.mxu0 %v20
  %65 = vmatprep.subr.mxu0 0.0
  %66 = vmatpush1.msra.mxu0 %v19
  %67 = vmatprep.subr.mxu0 0.0
  %68 = vmatpush2.msra.mxu0 0.0
  %69 = vmatprep.subr.mxu0 0.0
  %70 = vmatpush2.msra.mxu0 0.0
  %71 = vmatprep.subr.mxu0 0.0
  %72 = vmatpush2.msra.mxu0 0.0
  %73 = vmatprep.subr.mxu0 0.0
  %74 = vmatpush2.msra.mxu0 0.0
  %75 = vmatprep.subr.mxu0 0.0
  %76 = vmatpush2.msra.mxu0 0.0
  %77 = vmatprep.subr.mxu0 0.0
  %78 = vmatpush2.msra.mxu0 0.0
  %79 = vmatprep.subr.mxu0 0.0
  %80 = vmatpush2.msra.mxu0 0.0
  %81 = vmatprep.subr.mxu0 0.0
  %82 = vmatpush2.msra.mxu0 0.0
  %83 = vmatprep.subr.mxu0 0.0
  %84 = vmatpush2.msra.mxu0 0.0
  %85 = vmatprep.subr.mxu0 0.0
  %86 = vmatpush2.msra.mxu0 0.0
  %87 = vmatprep.subr.mxu0 0.0
  %88 = vmatpush2.msra.mxu0 0.0
  %89 = vmatprep.subr.mxu0 0.0
  %90 = vmatpush2.msra.mxu0 0.0
  %91 = vmatprep.subr.mxu0 0.0
  %92 = vmatpush2.msra.mxu0 0.0
  %93 = vmatprep.subr.mxu0 0.0
  %94 = vmatpush2.msra.mxu0 0.0
  %95 = vmatprep.subr.mxu0 0.0
  %96 = vmatpush2.msra.mxu0 0.0
  %97 = vmatprep.subr.mxu0 0.0
  %98 = vmatpush2.msra.mxu0 0.0
  %99 = vmatprep.mubr.f32.mxu0 0.0
  %100 = vmatmul.mubr.f32.gmra.mxu0 %v11
  %v101 = vpop.f32.mrf.mxu0
  %v102 = vadd.f32 0.0, %v101
  %v103 = vpop.f32.mrf.mxu0
  %104 = vmatprep.mubr.f32.mxu0 0.0
  %105 = vmatmul.mubr.f32.gmra.mxu0 %v12
  %v106 = vpop.f32.mrf.mxu0
  %v107 = vadd.f32 0.0, %v106
  %v108 = vpop.f32.mrf.mxu0
  %109 = vmatprep.mubr.f32.mxu0 0.0
  %110 = vmatmul.mubr.f32.gmra.mxu0 %v13
  %v111 = vpop.f32.mrf.mxu0
  %v112 = vadd.f32 0.0, %v111
  %v113 = vpop.f32.mrf.mxu0
  %114 = vmatprep.mubr.f32.mxu0 0.0
  %115 = vmatmul.mubr.f32.gmra.mxu0 %v14
  %v116 = vpop.f32.mrf.mxu0
  %v117 = vadd.f32 0.0, %v116
  %v118 = vpop.f32.mrf.mxu0
  %119 = vmatprep.mubr.f32.mxu0 0.0
  %120 = vmatmul.mubr.f32.gmra.mxu0 %v15
  %v121 = vpop.f32.mrf.mxu0
  %v122 = vadd.f32 0.0, %v121
  %v123 = vpop.f32.mrf.mxu0
  %124 = vmatprep.mubr.f32.mxu0 0.0
  %125 = vmatmul.mubr.f32.gmra.mxu0 %v16
  %v126 = vpop.f32.mrf.mxu0
  %v127 = vadd.f32 0.0, %v126
  %v128 = vpop.f32.mrf.mxu0
  %129 = vmatprep.mubr.f32.mxu0 0.0
  %130 = vmatmul.mubr.f32.gmra.mxu0 %v17
  %v131 = vpop.f32.mrf.mxu0
  %v132 = vadd.f32 0.0, %v131
  %v133 = vpop.f32.mrf.mxu0
  %134 = vmatprep.mubr.f32.mxu0 0.0
  %135 = vmatmul.mubr.f32.gmra.mxu0 %v18
  %v136 = vpop.f32.mrf.mxu0
  %v137 = vadd.f32 0.0, %v136
  %v138 = vpop.f32.mrf.mxu0
  %139 = vdwg.mxu0
  %v140 = vmax.f32 %v102, 0.0
  %v141 = vmax.f32 %v107, 0.0
  %v142 = vmax.f32 %v112, 0.0
  %v143 = vmax.f32 %v117, 0.0
  %v144 = vmax.f32 %v122, 0.0
  %v145 = vmax.f32 %v127, 0.0
  %v146 = vmax.f32 %v132, 0.0
  %v147 = vmax.f32 %v137, 0.0
  %v148 = vld [vmem:[%s0 + $0x40] sm:$0x3]
  %v149 = vld [vmem:[%s1 + $0xc0] sm:$0x3]
  %v150 = vmul.f32 %v148, %v149
  %v151 = vmax.f32 %v140, %v141
  %v152 = vmax.f32 %v142, %v143
  %v153 = vld [vmem:[%s1 + $0x80] sm:$0xff]
  %v154 = vmul.f32 %v151, %v153
  %v155 = vmul.f32 %v152, %v153
  %v156 = vrot.slane %v154, 4
  %v157 = vadd.f32 %v154, %v156
  %v158 = vrot.slane %v157, 2
  %v159 = vadd.f32 %v157, %v158
  %v160 = vrot.slane %v159, 1
  %v161 = vadd.f32 %v159, %v160
  %v162 = vrot.slane %v155, 4
  %v163 = vadd.f32 %v155, %v162
  %v164 = vrot.slane %v163, 2
  %v165 = vadd.f32 %v163, %v164
  %v166 = vrot.slane %v165, 1
  %v167 = vadd.f32 %v165, %v166
  %vm170 = vcmask 1041409
  %v171 = vsel %vm170, %v167, %v161
  %v173 = vadd.f32 %v150, %v171
  %v176 = vrot.slane %v140, 1
  %v177 = vrot.slane %v142, 1
  %v180 = vmax.f32 %v151, %v176
  %v181 = vmax.f32 %v152, %v177
  %v182 = vld [vmem:[%s1 + $0x90] sm:$0x7f]
  %v183 = vmul.f32 %v180, %v182
  %v184 = vmul.f32 %v181, %v182
  %vm185 = vcmask 1046528
  %v186 = vsel %vm185, %v183, 0.0
  %v187 = vrot.slane %v186, 4
  %v188 = vadd.f32 %v186, %v187
  %v189 = vrot.slane %v188, 2
  %v190 = vadd.f32 %v188, %v189
  %v191 = vrot.slane %v190, 1
  %v192 = vadd.f32 %v190, %v191
  %v193 = vsel %vm185, %v184, 0.0
  %v194 = vrot.slane %v193, 4
  %v195 = vadd.f32 %v193, %v194
  %v196 = vrot.slane %v195, 2
  %v197 = vadd.f32 %v195, %v196
  %v198 = vrot.slane %v197, 1
  %v199 = vadd.f32 %v197, %v198
  %v202 = vsel %vm170, %v199, %v192
  %v204 = vadd.f32 %v173, %v202
  %v207 = vrot.slane %v151, 1
  %v208 = vrot.slane %v152, 1
  %v211 = vmax.f32 %v151, %v207
  %v212 = vmax.f32 %v152, %v208
  %v213 = vld [vmem:[%s1 + $0xa0] sm:$0x3f]
  %v214 = vmul.f32 %v211, %v213
  %v215 = vmul.f32 %v212, %v213
  %vm216 = vcmask 1045504
  %v217 = vsel %vm216, %v214, 0.0
  %v218 = vrot.slane %v217, 4
  %v219 = vadd.f32 %v217, %v218
  %v220 = vrot.slane %v219, 2
  %v221 = vadd.f32 %v219, %v220
  %v222 = vrot.slane %v221, 1
  %v223 = vadd.f32 %v221, %v222
  %v224 = vsel %vm216, %v215, 0.0
  %v225 = vrot.slane %v224, 4
  %v226 = vadd.f32 %v224, %v225
  %v227 = vrot.slane %v226, 2
  %v228 = vadd.f32 %v226, %v227
  %v229 = vrot.slane %v228, 1
  %v230 = vadd.f32 %v228, %v229
  %v233 = vsel %vm170, %v230, %v223
  %v235 = vadd.f32 %v204, %v233
  %v236 = vrot.slane %v140, 2
  %v237 = vrot.slane %v142, 2
  %v240 = vmax.f32 %v211, %v236
  %v241 = vmax.f32 %v212, %v237
  %v242 = vld [vmem:[%s1 + $0xb0] sm:$0x1f]
  %v243 = vmul.f32 %v240, %v242
  %v244 = vmul.f32 %v241, %v242
  %vm245 = vcmask 1044480
  %v246 = vsel %vm245, %v243, 0.0
  %v247 = vrot.slane %v246, 4
  %v248 = vadd.f32 %v246, %v247
  %v249 = vrot.slane %v248, 2
  %v250 = vadd.f32 %v248, %v249
  %v251 = vrot.slane %v250, 1
  %v252 = vadd.f32 %v250, %v251
  %v253 = vsel %vm245, %v244, 0.0
  %v254 = vrot.slane %v253, 4
  %v255 = vadd.f32 %v253, %v254
  %v256 = vrot.slane %v255, 2
  %v257 = vadd.f32 %v255, %v256
  %v258 = vrot.slane %v257, 1
  %v259 = vadd.f32 %v257, %v258
  %v262 = vsel %vm170, %v259, %v252
  %v264 = vadd.f32 %v235, %v262
  %v265 = vmax.f32 %v144, %v145
  %v266 = vmax.f32 %v146, %v147
  %v267 = vld [vmem:[%s1 + $0x88] sm:$0xff]
  %v268 = vmul.f32 %v265, %v267
  %v269 = vmul.f32 %v266, %v267
  %v270 = vrot.slane %v268, 4
  %v271 = vadd.f32 %v268, %v270
  %v272 = vrot.slane %v271, 2
  %v273 = vadd.f32 %v271, %v272
  %v274 = vrot.slane %v273, 1
  %v275 = vadd.f32 %v273, %v274
  %v276 = vrot.slane %v269, 4
  %v277 = vadd.f32 %v269, %v276
  %v278 = vrot.slane %v277, 2
  %v279 = vadd.f32 %v277, %v278
  %v280 = vrot.slane %v279, 1
  %v281 = vadd.f32 %v279, %v280
  %v284 = vsel %vm170, %v281, %v275
  %v286 = vadd.f32 %v264, %v284
  %v289 = vrot.slane %v144, 1
  %v290 = vrot.slane %v146, 1
  %v293 = vmax.f32 %v265, %v289
  %v294 = vmax.f32 %v266, %v290
  %v295 = vld [vmem:[%s1 + $0x98] sm:$0x7f]
  %v296 = vmul.f32 %v293, %v295
  %v297 = vmul.f32 %v294, %v295
  %v298 = vsel %vm185, %v296, 0.0
  %v299 = vrot.slane %v298, 4
  %v300 = vadd.f32 %v298, %v299
  %v301 = vrot.slane %v300, 2
  %v302 = vadd.f32 %v300, %v301
  %v303 = vrot.slane %v302, 1
  %v304 = vadd.f32 %v302, %v303
  %v305 = vsel %vm185, %v297, 0.0
  %v306 = vrot.slane %v305, 4
  %v307 = vadd.f32 %v305, %v306
  %v308 = vrot.slane %v307, 2
  %v309 = vadd.f32 %v307, %v308
  %v310 = vrot.slane %v309, 1
  %v311 = vadd.f32 %v309, %v310
  %v314 = vsel %vm170, %v311, %v304
  %v316 = vadd.f32 %v286, %v314
  %v319 = vrot.slane %v265, 1
  %v320 = vrot.slane %v266, 1
  %v323 = vmax.f32 %v265, %v319
  %v324 = vmax.f32 %v266, %v320
  %v325 = vld [vmem:[%s1 + $0xa8] sm:$0x3f]
  %v326 = vmul.f32 %v323, %v325
  %v327 = vmul.f32 %v324, %v325
  %v328 = vsel %vm216, %v326, 0.0
  %v329 = vrot.slane %v328, 4
  %v330 = vadd.f32 %v328, %v329
  %v331 = vrot.slane %v330, 2
  %v332 = vadd.f32 %v330, %v331
  %v333 = vrot.slane %v332, 1
  %v334 = vadd.f32 %v332, %v333
  %v335 = vsel %vm216, %v327, 0.0
  %v336 = vrot.slane %v335, 4
  %v337 = vadd.f32 %v335, %v336
  %v338 = vrot.slane %v337, 2
  %v339 = vadd.f32 %v337, %v338
  %v340 = vrot.slane %v339, 1
  %v341 = vadd.f32 %v339, %v340
  %v344 = vsel %vm170, %v341, %v334
  %v346 = vadd.f32 %v316, %v344
  %v347 = vrot.slane %v144, 2
  %v348 = vrot.slane %v146, 2
  %v351 = vmax.f32 %v323, %v347
  %v352 = vmax.f32 %v324, %v348
  %v353 = vld [vmem:[%s1 + $0xb8] sm:$0x1f]
  %v354 = vmul.f32 %v351, %v353
  %v355 = vmul.f32 %v352, %v353
  %v356 = vsel %vm245, %v354, 0.0
  %v357 = vrot.slane %v356, 4
  %v358 = vadd.f32 %v356, %v357
  %v359 = vrot.slane %v358, 2
  %v360 = vadd.f32 %v358, %v359
  %v361 = vrot.slane %v360, 1
  %v362 = vadd.f32 %v360, %v361
  %v363 = vsel %vm245, %v355, 0.0
  %v364 = vrot.slane %v363, 4
  %v365 = vadd.f32 %v363, %v364
  %v366 = vrot.slane %v365, 2
  %v367 = vadd.f32 %v365, %v366
  %v368 = vrot.slane %v367, 1
  %v369 = vadd.f32 %v367, %v368
  %v372 = vsel %vm170, %v369, %v362
  %v374 = vadd.f32 %v346, %v372
  %vm375 = vcmask 1041408
  %v376 = vsel %vm375, %v374, 0.0
  %377 = vadd.xlane.f32.xlu0 %v376
  %v378 = vpop.xlane.xlu0 %377
  %v379 = vsub.f32 0.0, %v378
  %v380 = vmul.f32 %v379, 1.442695
  %v381 = vpow.pop %v380
  %v382 = vadd.f32 %v381, 1.0
  %v383 = vrcp.pop %v382
  %v384 = vmul.f32 1.0, %v383
  %385 = vst [vmem:[%s2] sm:$0x3] %v384
  // Predicated region
  $region10: #{cnn_post_classifier.1} parent=0 // pred_check
    _
  $region11: #{cnn_post_classifier.1} parent=0 // pred_check_branch
    %387 = sbr.rel (0) target = $region13
  $region12: #{cnn_post_classifier.1} parent=0 // pred_region
    _
  $region13: #{cnn_post_classifier.1} parent=0 // pred_fallthru
    _
  // Predicated region
  $region14: #{cnn_post_classifier.1} parent=0 // pred_check
    _
  $region15: #{cnn_post_classifier.1} parent=0 // pred_check_branch
    %389 = sbr.rel (0) target = $region17
  $region16: #{cnn_post_classifier.1} parent=0 // pred_region
    _
  $region17: #{cnn_post_classifier.1} parent=0 // pred_fallthru
    _

</llo_original>
